<compile_context>
chip_gen: v6e
topology: v6e:2x2x1
jax: 0.10.0
libtpu: 0.0.40
codegen_flags: <defaults>
</compile_context>

<pallas_src>
import functools

import jax
import jax.numpy as jnp
from jax.experimental import pallas as pl
from jax.experimental.pallas import tpu as pltpu


def _pcproj_kernel(x_ref, w_ref, b_ref, g_ref, beta_ref, o_ref, *, tokens, cross_dim, eps):
    # x_ref:    (TB, E)     batch-block of input rows
    # w_ref:    (E, T*D)    projection weight (pre-transposed), resident, single-buffered
    # b_ref:    (1, T*D)    projection bias
    # g_ref:    (1, T*D)    LayerNorm gamma, tiled token-wise to T*D lanes
    # beta_ref: (1, T*D)    LayerNorm beta, tiled token-wise to T*D lanes
    # o_ref:    (TB, T*D)   lane-dense output block
    tb = x_ref.shape[0]
    td = tokens * cross_dim

    # Linear: (TB, E) @ (E, T*D) on the MXU, native input dtype, f32 accumulation.
    y = jnp.dot(x_ref[...], w_ref[...], preferred_element_type=jnp.float32)
    y = y + b_ref[...].astype(jnp.float32)

    # Per-token LayerNorm: exact f32 last-axis reductions on a (TB, T, D) view.
    y3 = y.reshape(tb, tokens, cross_dim)
    mean = jnp.mean(y3, axis=-1, keepdims=True)
    centered = y3 - mean
    var = jnp.mean(centered * centered, axis=-1, keepdims=True)
    inv = jax.lax.rsqrt(var + eps)
    norm = (centered * inv).reshape(tb, td)

    out = norm * g_ref[...].astype(jnp.float32) + beta_ref[...].astype(jnp.float32)
    o_ref[...] = out.astype(o_ref.dtype)


def _const_spec(shape):
    """Constant-index-map BlockSpec; single-buffered when the API supports it."""
    index_map = lambda b: (0, 0)
    try:
        return pl.BlockSpec(shape, index_map, pipeline_mode=pl.Buffered(1))
    except (TypeError, AttributeError):
        return pl.BlockSpec(shape, index_map)


def pc_proj_model(pc_embeds, proj_w, proj_b, ln_gamma, ln_beta, *,
                  tokens, cross_dim, eps=1e-5, tile_b=None):
    """pc_embeds: (B, E); proj_w: (E, T*D); proj_b: (T*D,); ln_gamma/ln_beta: (D,)."""
    B, E = pc_embeds.shape
    TD = tokens * cross_dim
    assert proj_w.shape == (E, TD)

    x_bytes = jnp.dtype(pc_embeds.dtype).itemsize
    w_bytes = jnp.dtype(proj_w.dtype).itemsize

    # Generation-aware VMEM budget: query capacity (fallback = v7x's 64 MiB per core)
    # and leave >=16 MiB headroom for Mosaic internal scratch.
    try:
        vmem_cap = int(pltpu.get_tpu_info().vmem_capacity_bytes)
    except Exception:  # conservative default works on every generation
        vmem_cap = 64 * 1024 * 1024
    vmem_budget = max(vmem_cap - 16 * 1024 * 1024, 16 * 1024 * 1024)

    def footprint(tb):
        const_bytes = E * TD * w_bytes + 3 * TD * 4               # single-buffered constants
        io_bytes = 2 * tb * E * x_bytes + 2 * tb * TD * x_bytes   # double-buffered x / out blocks
        interm_bytes = 6 * tb * TD * 4                            # live f32 intermediates
        return const_bytes + io_bytes + interm_bytes

    if tile_b is None:
        # Larger batch tiles on 128 MiB parts (v5e/v6e); on v7x keep >=2 grid steps
        # whenever B > 8 so both TensorCores get work under "parallel".
        cap = 512 if vmem_cap >= (100 << 20) else 256
        if B <= 8:
            tile_b = B
        else:
            tile_b = min(cap, ((B + 1) // 2 + 7) // 8 * 8)
        # Shrink (sublane-aligned) until the working set fits the budget.
        while tile_b > 8 and footprint(tile_b) > vmem_budget:
            tile_b = max(8, (tile_b // 2 + 7) // 8 * 8)

    grid_b = pl.cdiv(B, tile_b)

    proj_b2 = proj_b.reshape(1, TD)
    # Tile gamma/beta to T*D lanes (lane -> feature d = lane % D) for a lane-dense epilogue.
    gamma2 = jnp.tile(ln_gamma.reshape(1, cross_dim), (1, tokens))
    beta2 = jnp.tile(ln_beta.reshape(1, cross_dim), (1, tokens))

    vmem_limit = int(min(max(2 * footprint(tile_b), 32 * 1024 * 1024), vmem_budget))

    cost = pl.CostEstimate(
        flops=2 * B * E * TD + 8 * B * TD,       # projection + LN elementwise
        transcendentals=B * tokens,              # one rsqrt per (row, token)
        bytes_accessed=(E * TD * w_bytes + B * E * x_bytes + B * TD * x_bytes + 3 * TD * 4),
    )

    kernel = functools.partial(_pcproj_kernel, tokens=tokens, cross_dim=cross_dim, eps=eps)

    out2d = pl.pallas_call(
        kernel,
        out_shape=jax.ShapeDtypeStruct((B, TD), pc_embeds.dtype),
        grid_spec=pltpu.PrefetchScalarGridSpec(
            num_scalar_prefetch=0,
            grid=(grid_b,),
            in_specs=[
                pl.BlockSpec((tile_b, E), lambda b: (b, 0)),   # batch block of inputs
                _const_spec((E, TD)),                          # weight (fetched once)
                _const_spec((1, TD)),                          # bias
                _const_spec((1, TD)),                          # LN gamma (tiled)
                _const_spec((1, TD)),                          # LN beta (tiled)
            ],
            out_specs=pl.BlockSpec((tile_b, TD), lambda b: (b, 0)),  # lane-dense 2-D output
        ),
        compiler_params=pltpu.CompilerParams(
            dimension_semantics=("parallel",),
            vmem_limit_bytes=vmem_limit,
        ),
        cost_estimate=cost,
    )(pc_embeds, proj_w, proj_b2, gamma2, beta2)

    # Final (B, T, D) view is a free metadata reshape outside the kernel.
    return out2d.reshape(B, tokens, cross_dim)


def pc_proj_model_ref(pc_embeds, proj_w, proj_b, ln_gamma, ln_beta, *, tokens, cross_dim, eps=1e-5):
    """Pure-JAX reference matching the PyTorch forward."""
    y = pc_embeds.astype(jnp.float32) @ proj_w.astype(jnp.float32) + proj_b.astype(jnp.float32)
    y = y.reshape(-1, tokens, cross_dim)
    mean = jnp.mean(y, axis=-1, keepdims=True)
    var = jnp.mean((y - mean) ** 2, axis=-1, keepdims=True)
    y = (y - mean) * jax.lax.rsqrt(var + eps)
    return (y * ln_gamma + ln_beta).astype(pc_embeds.dtype)


if __name__ == "__main__":
    # Small shapes consistent with the module:
    #   cross_attention_dim=32, clip_embeddings_dim=32, clip_extra_context_tokens=4, batch=2
    B = 2
    clip_embeddings_dim = 32
    cross_attention_dim = 32
    clip_extra_context_tokens = 4
    TD = clip_extra_context_tokens * cross_attention_dim  # 128

    key = jax.random.PRNGKey(0)
    k_x, k_w, k_b = jax.random.split(key, 3)

    pc_embeds = jax.random.normal(k_x, (B, clip_embeddings_dim), dtype=jnp.float32)
    # Deterministic parameter init (shapes from nn.Linear / nn.LayerNorm defaults).
    proj_w = jax.random.normal(k_w, (clip_embeddings_dim, TD), dtype=jnp.float32) * 0.02
    proj_b = jax.random.normal(k_b, (TD,), dtype=jnp.float32) * 0.02
    ln_gamma = jnp.ones((cross_attention_dim,), dtype=jnp.float32)   # PyTorch LayerNorm default
    ln_beta = jnp.zeros((cross_attention_dim,), dtype=jnp.float32)

    out = pc_proj_model(
        pc_embeds, proj_w, proj_b, ln_gamma, ln_beta,
        tokens=clip_extra_context_tokens, cross_dim=cross_attention_dim,
    )
    out = jax.block_until_ready(out)

    ref = pc_proj_model_ref(
        pc_embeds, proj_w, proj_b, ln_gamma, ln_beta,
        tokens=clip_extra_context_tokens, cross_dim=cross_attention_dim,
    )
    assert out.shape == (B, clip_extra_context_tokens, cross_attention_dim)
    assert jnp.allclose(out, ref, atol=1e-4, rtol=1e-4), "mismatch vs reference"

    print("KERNEL_OK")
</pallas_src>

<mosaic_0001>
module attributes {stable_mosaic.version = 11 : i64} {
  func.func @_pcproj_kernel(%arg0: i32, %arg1: memref<2x32xf32, #tpu.memory_space<vmem>>, %arg2: memref<32x128xf32, #tpu.memory_space<vmem>>, %arg3: memref<1x128xf32, #tpu.memory_space<vmem>>, %arg4: memref<1x128xf32, #tpu.memory_space<vmem>>, %arg5: memref<1x128xf32, #tpu.memory_space<vmem>>, %arg6: memref<2x128xf32, #tpu.memory_space<vmem>>) attributes {dimension_semantics = [#tpu.dimension_semantics<parallel>], iteration_bounds = array<i64: 1>, scalar_prefetch = 0 : i64, scratch_operands = 0 : i64, tpu.core_type = #tpu.core_type<tc>, window_params = [{transform_indices = @transform_0, window_bounds = array<i64: 2, 32>}, {pipeline_mode = #tpu.pipeline_mode<synchronous>, transform_indices = @transform_1, window_bounds = array<i64: 32, 128>}, {pipeline_mode = #tpu.pipeline_mode<synchronous>, transform_indices = @transform_2, window_bounds = array<i64: 1, 128>}, {pipeline_mode = #tpu.pipeline_mode<synchronous>, transform_indices = @transform_3, window_bounds = array<i64: 1, 128>}, {pipeline_mode = #tpu.pipeline_mode<synchronous>, transform_indices = @transform_4, window_bounds = array<i64: 1, 128>}, {transform_indices = @transform_5, window_bounds = array<i64: 2, 128>}]} {
    %c0 = arith.constant 0 : index
    %c0_0 = arith.constant 0 : index
    %0 = vector.load %arg1[%c0, %c0_0] : memref<2x32xf32, #tpu.memory_space<vmem>>, vector<2x32xf32>
    %c0_1 = arith.constant 0 : index
    %c0_2 = arith.constant 0 : index
    %1 = vector.load %arg2[%c0_1, %c0_2] : memref<32x128xf32, #tpu.memory_space<vmem>>, vector<32x128xf32>
    %cst = arith.constant dense<0.000000e+00> : vector<2x128xf32>
    %2 = tpu.matmul %0, %1, %cst {dimension_numbers = #tpu.dot_dimension_numbers<[1], [0], [0], [1], [0, 0, 1, 1], [], []>} : vector<2x32xf32>, vector<32x128xf32>, vector<2x128xf32> -> vector<2x128xf32>
    %c0_3 = arith.constant 0 : index
    %c0_4 = arith.constant 0 : index
    %3 = vector.load %arg3[%c0_3, %c0_4] : memref<1x128xf32, #tpu.memory_space<vmem>>, vector<1x128xf32>
    %4 = vector.broadcast %3 : vector<1x128xf32> to vector<2x128xf32>
    %5 = arith.addf %2, %4 : vector<2x128xf32>
    %6 = vector.shape_cast %5 : vector<2x128xf32> to vector<2x4x32xf32>
    %cst_5 = arith.constant dense<0.000000e+00> : vector<2x4xf32>
    %7 = vector.multi_reduction <add>, %6, %cst_5 [2] : vector<2x4x32xf32> to vector<2x4xf32>
    %8 = vector.shape_cast %7 : vector<2x4xf32> to vector<2x4x1xf32>
    %cst_6 = arith.constant 3.200000e+01 : f32
    %9 = vector.broadcast %cst_6 : f32 to vector<2x4x1xf32>
    %10 = arith.divf %8, %9 : vector<2x4x1xf32>
    %11 = vector.broadcast %10 : vector<2x4x1xf32> to vector<2x4x32xf32>
    %12 = arith.subf %6, %11 : vector<2x4x32xf32>
    %13 = arith.mulf %12, %12 : vector<2x4x32xf32>
    %cst_7 = arith.constant dense<0.000000e+00> : vector<2x4xf32>
    %14 = vector.multi_reduction <add>, %13, %cst_7 [2] : vector<2x4x32xf32> to vector<2x4xf32>
    %15 = vector.shape_cast %14 : vector<2x4xf32> to vector<2x4x1xf32>
    %cst_8 = arith.constant 3.200000e+01 : f32
    %16 = vector.broadcast %cst_8 : f32 to vector<2x4x1xf32>
    %17 = arith.divf %15, %16 : vector<2x4x1xf32>
    %cst_9 = arith.constant 9.99999974E-6 : f32
    %18 = vector.broadcast %cst_9 : f32 to vector<2x4x1xf32>
    %19 = arith.addf %17, %18 : vector<2x4x1xf32>
    %20 = math.rsqrt %19 : vector<2x4x1xf32>
    %21 = vector.broadcast %20 : vector<2x4x1xf32> to vector<2x4x32xf32>
    %22 = arith.mulf %12, %21 : vector<2x4x32xf32>
    %23 = vector.shape_cast %22 : vector<2x4x32xf32> to vector<2x128xf32>
    %c0_10 = arith.constant 0 : index
    %c0_11 = arith.constant 0 : index
    %24 = vector.load %arg4[%c0_10, %c0_11] : memref<1x128xf32, #tpu.memory_space<vmem>>, vector<1x128xf32>
    %25 = vector.broadcast %24 : vector<1x128xf32> to vector<2x128xf32>
    %26 = arith.mulf %23, %25 : vector<2x128xf32>
    %c0_12 = arith.constant 0 : index
    %c0_13 = arith.constant 0 : index
    %27 = vector.load %arg5[%c0_12, %c0_13] : memref<1x128xf32, #tpu.memory_space<vmem>>, vector<1x128xf32>
    %28 = vector.broadcast %27 : vector<1x128xf32> to vector<2x128xf32>
    %29 = arith.addf %26, %28 : vector<2x128xf32>
    %c0_14 = arith.constant 0 : index
    %c0_15 = arith.constant 0 : index
    %30 = vector.load %arg6[%c0_14, %c0_15] : memref<2x128xf32, #tpu.memory_space<vmem>>, vector<2x128xf32>
    tpu.vector_store %arg6[%c0_14, %c0_15], %29 {strides = array<i32>} : memref<2x128xf32, #tpu.memory_space<vmem>>, vector<2x128xf32>,
    return
  }
  func.func @transform_0(%arg0: i32) -> (i32, i32) {
    %c0_i32 = arith.constant 0 : i32
    %c0_i32_0 = arith.constant 0 : i32
    return %arg0, %c0_i32 : i32, i32
  }
  func.func @transform_1(%arg0: i32) -> (i32, i32) {
    %c0_i32 = arith.constant 0 : i32
    %c0_i32_0 = arith.constant 0 : i32
    %c0_i32_1 = arith.constant 0 : i32
    return %c0_i32, %c0_i32_0 : i32, i32
  }
  func.func @transform_2(%arg0: i32) -> (i32, i32) {
    %c0_i32 = arith.constant 0 : i32
    %c0_i32_0 = arith.constant 0 : i32
    %c0_i32_1 = arith.constant 0 : i32
    return %c0_i32, %c0_i32_0 : i32, i32
  }
  func.func @transform_3(%arg0: i32) -> (i32, i32) {
    %c0_i32 = arith.constant 0 : i32
    %c0_i32_0 = arith.constant 0 : i32
    %c0_i32_1 = arith.constant 0 : i32
    return %c0_i32, %c0_i32_0 : i32, i32
  }
  func.func @transform_4(%arg0: i32) -> (i32, i32) {
    %c0_i32 = arith.constant 0 : i32
    %c0_i32_0 = arith.constant 0 : i32
    %c0_i32_1 = arith.constant 0 : i32
    return %c0_i32, %c0_i32_0 : i32, i32
  }
  func.func @transform_5(%arg0: i32) -> (i32, i32) {
    %c0_i32 = arith.constant 0 : i32
    %c0_i32_0 = arith.constant 0 : i32
    return %arg0, %c0_i32 : i32, i32
  }
}

</mosaic_0001>

<llo_original>
// kernel: tpu_custom_call.1
$region0: #{tpu_custom_call.1}
  #allocation0 [shape = 'u32[]', space=smem, size = 0x4, offset = 0x4, fixed_abs, tag = 'smem constant byte address 0x4 - core index']
  #allocation1 [shape = 'u32[144,128]{1,0:T(1,128)}', space=vmem, size = 0x12000, scoped, tag = 'internal scratch']
  %s0 = inlined_call_operand.hbm [shape: f32[2,32], index: 0, kind: input, shape index: {}]
  %s1 = inlined_call_operand.hbm [shape: f32[32,128], index: 1, kind: input, shape index: {}]
  %s2 = inlined_call_operand.vmem [shape: f32[1,128], index: 2, kind: input, shape index: {}]
  %s3 = inlined_call_operand.vmem [shape: f32[1,128], index: 3, kind: input, shape index: {}]
  %s4 = inlined_call_operand.vmem [shape: f32[1,128], index: 4, kind: input, shape index: {}]
  %s5 = inlined_call_operand.hbm [shape: f32[2,128], index: 5, kind: output, shape index: {}]
  %s6 = sld [smem:[#allocation0]]
  $region38: #{tpu_custom_call.1} parent=0
    _
  %s8 = ssub.s32 1, %s6
  %s9 = scalar_select 0, %s8, %s6
  $region1: #{tpu_custom_call.1} parent=0
    #allocation2 [shape = 'u8[1024]{0}', space=vmem, size = 0x400, scoped, tag = 'input window, operand 0, single buffered']
    #allocation3 [shape = 's32[1]{0}', space=sflag, size = 0x4, scoped, tag = 'scoped memory for tpu_custom_call.1']
    #allocation4 [shape = 's32[1]{0}', space=sflag, size = 0x4, scoped, tag = 'scoped memory for tpu_custom_call.1']
    #allocation5 [shape = 'u8[16384]{0}', space=vmem, size = 0x4000, scoped, tag = 'input window, operand 1, single buffered']
    #allocation6 [shape = 's32[1]{0}', space=sflag, size = 0x4, scoped, tag = 'scoped memory for tpu_custom_call.1']
    #allocation7 [shape = 'u8[1024]{0}', space=vmem, size = 0x400, scoped, tag = 'output window, operand 0, single buffered']
    %10 = vsyncpa [#allocation3], 0
    %11 = vsyncpa [#allocation6], 0
    %12 = vsyncpa [#allocation4], 0
    // Predicated region
    $region2: #{tpu_custom_call.1} parent=1 // pred_check
      _
    $region3: #{tpu_custom_call.1} parent=1 // pred_check_branch
      %14 = sbr.rel (0) target = $region5
    $region4: #{tpu_custom_call.1} parent=1 // pred_region
      %s16 = ssub.s32 32, 32
      %17 = vsyncadd [#allocation3], %s16
      %s19 = sshll.u32 [#allocation2], 4
      %s20 = int_to_ptr.vmem [resolvable:$true] %s19
      %22 = dma.hbm_to_vmem [thread:$0]  %s0, 32, %s20, [#allocation3]
    $region5: #{tpu_custom_call.1} parent=1 // pred_fallthru
      _
    // Predicated region
    $region6: #{tpu_custom_call.1} parent=1 // pred_check
      _
    $region7: #{tpu_custom_call.1} parent=1 // pred_check_branch
      %24 = sbr.rel (0) target = $region9
    $region8: #{tpu_custom_call.1} parent=1 // pred_region
      %s26 = ssub.s32 512, 512
      %27 = vsyncadd [#allocation6], %s26
      %s28 = sshll.u32 [#allocation5], 4
      %s29 = int_to_ptr.vmem [resolvable:$true] %s28
      %34 = dma.hbm_to_vmem [thread:$0]  %s1, 512, %s29, [#allocation6], 128, 128, 8
    $region9: #{tpu_custom_call.1} parent=1 // pred_fallthru
      _
    // Predicated region
    $region10: #{tpu_custom_call.1} parent=1 // pred_check
      _
    $region11: #{tpu_custom_call.1} parent=1 // pred_check_branch
      %36 = sbr.rel (0) target = $region13
    $region12: #{tpu_custom_call.1} parent=1 // pred_region
      _
    $region13: #{tpu_custom_call.1} parent=1 // pred_fallthru
      _
    // Predicated region
    $region14: #{tpu_custom_call.1} parent=1 // pred_check
      _
    $region15: #{tpu_custom_call.1} parent=1 // pred_check_branch
      %38 = sbr.rel (0) target = $region17
    $region16: #{tpu_custom_call.1} parent=1 // pred_region
      _
    $region17: #{tpu_custom_call.1} parent=1 // pred_fallthru
      _
    // Predicated region
    $region18: #{tpu_custom_call.1} parent=1 // pred_check
      _
    $region19: #{tpu_custom_call.1} parent=1 // pred_check_branch
      %40 = sbr.rel (0) target = $region21
    $region20: #{tpu_custom_call.1} parent=1 // pred_region
      _
    $region21: #{tpu_custom_call.1} parent=1 // pred_fallthru
      _
    // Predicated region
    $region22: #{tpu_custom_call.1} parent=1 // pred_check
      _
    $region23: #{tpu_custom_call.1} parent=1 // pred_check_branch
      %42 = sbr.rel (0) target = $region25
    $region24: #{tpu_custom_call.1} parent=1 // pred_region
      %43 = dma.done [#allocation3], 32
    $region25: #{tpu_custom_call.1} parent=1 // pred_fallthru
      _
    // Predicated region
    $region26: #{tpu_custom_call.1} parent=1 // pred_check
      _
    $region27: #{tpu_custom_call.1} parent=1 // pred_check_branch
      %45 = sbr.rel (0) target = $region29
    $region28: #{tpu_custom_call.1} parent=1 // pred_region
      %46 = dma.done [#allocation6], 512
    $region29: #{tpu_custom_call.1} parent=1 // pred_fallthru
      _
    %v47 = vld [vmem:[#allocation2] sm:$0x3]
    %v48 = vld [vmem:[#allocation5] sm:$0xff]
    %v49 = vld [vmem:[#allocation5 + $0x8] sm:$0xff]
    %v50 = vld [vmem:[#allocation5 + $0x10] sm:$0xff]
    %v51 = vld [vmem:[#allocation5 + $0x18] sm:$0xff]
    %v52 = vld [vmem:[%s2] sm:$0x1]
    %v54 = vlaneseq
    %v55 = vshrl.u32 %v54, 7
    %v56 = vsub.s32 0, %v55
    %v57 = vrot.slane %v52, %v56
    %vm59 = vcmask 261120
    %v61 = vsel %vm59, %v47, 0
    %63 = vmatprep.subr.mxu0 0.0
    %64 = vmatpush1.msra.mxu0 0.0
    %65 = vmatprep.subr.mxu0 0.0
    %66 = vmatpush1.msra.mxu0 0.0
    %67 = vmatprep.subr.mxu0 0.0
    %68 = vmatpush1.msra.mxu0 0.0
    %69 = vmatprep.subr.mxu0 0.0
    %70 = vmatpush1.msra.mxu0 0.0
    %71 = vmatprep.subr.mxu0 0.0
    %72 = vmatpush1.msra.mxu0 0.0
    %73 = vmatprep.subr.mxu0 0.0
    %74 = vmatpush1.msra.mxu0 0.0
    %75 = vmatprep.subr.mxu0 0.0
    %76 = vmatpush1.msra.mxu0 0.0
    %77 = vmatprep.subr.mxu0 0.0
    %78 = vmatpush1.msra.mxu0 0.0
    %79 = vmatprep.subr.mxu0 0.0
    %80 = vmatpush1.msra.mxu0 0.0
    %81 = vmatprep.subr.mxu0 0.0
    %82 = vmatpush1.msra.mxu0 0.0
    %83 = vmatprep.subr.mxu0 0.0
    %84 = vmatpush1.msra.mxu0 0.0
    %85 = vmatprep.subr.mxu0 0.0
    %86 = vmatpush1.msra.mxu0 0.0
    %87 = vmatprep.subr.mxu0 0.0
    %88 = vmatpush1.msra.mxu0 %v51
    %89 = vmatprep.subr.mxu0 0.0
    %90 = vmatpush1.msra.mxu0 %v50
    %91 = vmatprep.subr.mxu0 0.0
    %92 = vmatpush1.msra.mxu0 %v49
    %93 = vmatprep.subr.mxu0 0.0
    %94 = vmatpush1.msra.mxu0 %v48
    %95 = vmatprep.subr.mxu0 0.0
    %96 = vmatpush2.msra.mxu0 0.0
    %97 = vmatprep.subr.mxu0 0.0
    %98 = vmatpush2.msra.mxu0 0.0
    %99 = vmatprep.subr.mxu0 0.0
    %100 = vmatpush2.msra.mxu0 0.0
    %101 = vmatprep.subr.mxu0 0.0
    %102 = vmatpush2.msra.mxu0 0.0
    %103 = vmatprep.subr.mxu0 0.0
    %104 = vmatpush2.msra.mxu0 0.0
    %105 = vmatprep.subr.mxu0 0.0
    %106 = vmatpush2.msra.mxu0 0.0
    %107 = vmatprep.subr.mxu0 0.0
    %108 = vmatpush2.msra.mxu0 0.0
    %109 = vmatprep.subr.mxu0 0.0
    %110 = vmatpush2.msra.mxu0 0.0
    %111 = vmatprep.subr.mxu0 0.0
    %112 = vmatpush2.msra.mxu0 0.0
    %113 = vmatprep.subr.mxu0 0.0
    %114 = vmatpush2.msra.mxu0 0.0
    %115 = vmatprep.subr.mxu0 0.0
    %116 = vmatpush2.msra.mxu0 0.0
    %117 = vmatprep.subr.mxu0 0.0
    %118 = vmatpush2.msra.mxu0 0.0
    %119 = vmatprep.subr.mxu0 0.0
    %120 = vmatpush2.msra.mxu0 0.0
    %121 = vmatprep.subr.mxu0 0.0
    %122 = vmatpush2.msra.mxu0 0.0
    %123 = vmatprep.subr.mxu0 0.0
    %124 = vmatpush2.msra.mxu0 0.0
    %125 = vmatprep.subr.mxu0 0.0
    %126 = vmatpush2.msra.mxu0 0.0
    %127 = vmatprep.mubr.f32.mxu0 0.0
    %128 = vmatmul.mubr.f32.gmra.mxu0 %v61
    %v129 = vpop.f32.mrf.mxu0
    %v130 = vadd.f32 %v57, %v129
    %v131 = vpop.f32.mrf.mxu0
    %132 = vdwg.mxu0
    %134 = vrot.lane.b32.xlu0 %v130, 96
    %v135 = vpop.permute.xlu0 %134
    %137 = vrot.lane.b32.xlu0 %v130, 64
    %v138 = vpop.permute.xlu0 %137
    %140 = vrot.lane.b32.xlu0 %v130, 32
    %v141 = vpop.permute.xlu0 %140
    %v143 = vcombine.low %v130, %v138
    %v145 = vunpack.c.l.s4 1983009808
    %v146 = vunpack.c.0.s8 %v145
    %v147 = vlaneseq
    %v148 = vshrl.u32 %v147, 7
    %v149 = vsub.s32 %v146, %v148
    %v150 = vrot.slane %v143, %v149
    %v151 = vcombine.low %v135, %v141
    %v153 = vunpack.c.l.s4 1983009808
    %v154 = vunpack.c.0.s8 %v153
    %v155 = vlaneseq
    %v156 = vshrl.u32 %v155, 7
    %v157 = vsub.s32 %v154, %v156
    %v158 = vrot.slane %v151, %v157
    %v159 = vcombine.low %v150, %v158
    %v161 = vunpack.c.l.s4 1934713408
    %v162 = vunpack.c.0.s8 %v161
    %v163 = vlaneseq
    %v164 = vshrl.u32 %v163, 7
    %v165 = vsub.s32 %v162, %v164
    %v166 = vrot.slane %v159, %v165
    %v167 = vcombine.high %v166, 0.0
    %vm168 = vcmask 257024
    %v169 = vsel %vm168, %v166, 0.0
    %170 = vadd.xlane.f32.xlu0 %v169
    %v171 = vpop.xlane.xlu0 %170
    %v172 = vsel %vm168, %v167, 0.0
    %173 = vadd.xlane.f32.xlu0 %v172
    %v174 = vpop.xlane.xlu0 %173
    %v175 = vrcp.pop 32.0
    %v176 = vmul.f32 %v171, %v175
    %v177 = vmul.f32 %v174, %v175
    %v178 = vsub.f32 %v166, %v176
    %v179 = vsub.f32 %v167, %v177
    %v180 = vmul.f32 %v178, %v178
    %v181 = vmul.f32 %v179, %v179
    %v182 = vsel %vm168, %v180, 0.0
    %183 = vadd.xlane.f32.xlu0 %v182
    %v184 = vpop.xlane.xlu0 %183
    %v185 = vsel %vm168, %v181, 0.0
    %186 = vadd.xlane.f32.xlu0 %v185
    %v187 = vpop.xlane.xlu0 %186
    %v188 = vmul.f32 %v184, %v175
    %v189 = vmul.f32 %v187, %v175
    %v190 = vadd.f32 %v188, 1e-05
    %v191 = vadd.f32 %v189, 1e-05
    %v192 = vrsqrt.pop %v190
    %v193 = vrsqrt.pop %v191
    %v194 = vmul.f32 %v178, %v192
    %v196 = vunpack.c.l.s4 1983009808
    %v197 = vunpack.c.0.s8 %v196
    %v198 = vlaneseq
    %v199 = vshrl.u32 %v198, 7
    %v200 = vsub.s32 %v197, %v199
    %v201 = vrot.slane %v194, %v200
    %v202 = vmul.f32 %v179, %v193
    %v204 = vunpack.c.l.s4 1983009808
    %v205 = vunpack.c.0.s8 %v204
    %v206 = vlaneseq
    %v207 = vshrl.u32 %v206, 7
    %v208 = vsub.s32 %v205, %v207
    %v209 = vrot.slane %v202, %v208
    %v210 = vcombine.low %v201, %v209
    %v211 = vcombine.high %v201, %v209
    %v213 = vunpack.c.l.s4 1934713408
    %v214 = vunpack.c.0.s8 %v213
    %v215 = vlaneseq
    %v216 = vshrl.u32 %v215, 7
    %v217 = vsub.s32 %v214, %v216
    %v218 = vrot.slane %v210, %v217
    %v220 = vunpack.c.l.s4 1934713408
    %v221 = vunpack.c.0.s8 %v220
    %v222 = vlaneseq
    %v223 = vshrl.u32 %v222, 7
    %v224 = vsub.s32 %v221, %v223
    %v225 = vrot.slane %v211, %v224
    %v226 = vcombine.high %v218, 0.0
    %v227 = vcombine.high %v225, 0.0
    %229 = vrot.lane.b32.xlu0 %v226, 32
    %v230 = vpop.permute.xlu0 %229
    %233 = vrot.lane.b32.xlu0 %v225, 64
    %v234 = vpop.permute.xlu0 %233
    %237 = vrot.lane.b32.xlu0 %v227, 96
    %v238 = vpop.permute.xlu0 %237
    %v240 = vsel %vm59, %v218, %v230
    %vm241 = vcmask 523264
    %v242 = vsel %vm241, %v240, %v234
    %vm243 = vcmask 785408
    %v244 = vsel %vm243, %v242, %v238
    %v245 = vld [vmem:[%s3] sm:$0x1]
    %v247 = vlaneseq
    %v248 = vshrl.u32 %v247, 7
    %v249 = vsub.s32 0, %v248
    %v250 = vrot.slane %v245, %v249
    %v252 = vmul.f32 %v244, %v250
    %v253 = vld [vmem:[%s4] sm:$0x1]
    %v255 = vlaneseq
    %v256 = vshrl.u32 %v255, 7
    %v257 = vsub.s32 0, %v256
    %v258 = vrot.slane %v253, %v257
    %v260 = vadd.f32 %v252, %v258
    %261 = vst [vmem:[#allocation7] sm:$0x3] %v260
    // Predicated region
    $region30: #{tpu_custom_call.1} parent=1 // pred_check
      _
    $region31: #{tpu_custom_call.1} parent=1 // pred_check_branch
      %263 = sbr.rel (0) target = $region33
    $region32: #{tpu_custom_call.1} parent=1 // pred_region
      %s265 = ssub.s32 32, 32
      %266 = vsyncadd [#allocation4], %s265
      %s268 = sshll.u32 [#allocation7], 4
      %s269 = int_to_ptr.vmem [resolvable:$true] %s268
      %271 = dma.vmem_to_hbm [thread:$0]  %s269, 32, %s5, [#allocation4]
    $region33: #{tpu_custom_call.1} parent=1 // pred_fallthru
      _
    // Predicated region
    $region34: #{tpu_custom_call.1} parent=1 // pred_check
      _
    $region35: #{tpu_custom_call.1} parent=1 // pred_check_branch
      %273 = sbr.rel (0) target = $region37
    $region36: #{tpu_custom_call.1} parent=1 // pred_region
      %274 = dma.done [#allocation4], 32
    $region37: #{tpu_custom_call.1} parent=1 // pred_fallthru
      _
    %275 = vsyncpa [#allocation3], 1
    %276 = vsyncpa [#allocation6], 1
    %277 = vsyncpa [#allocation4], 1

</llo_original>
